<compile_context>
chip_gen: v6e
topology: v6e:2x2x1
jax: 0.10.0
libtpu: 0.0.40
codegen_flags: <defaults>
</compile_context>

<pallas_src>
import numpy as np
import jax
import jax.numpy as jnp
from jax.experimental import pallas as pl
from jax.experimental.pallas import tpu as pltpu


def _round_up(x, m):
    return (x + m - 1) // m * m


# ---------------------------------------------------------------------------
# Deterministic parameter construction (mirrors the PyTorch module __init__)
# ---------------------------------------------------------------------------
def norm_cm(L):
    m = np.arange(-(L - 1), L)
    sign = np.where(m % 2 == 0, 1.0, -1.0)
    return sign * np.sqrt(2.0 * np.pi)


def idct_matrix(N):
    kk, nn = np.meshgrid(np.arange(N, dtype=np.float64),
                         np.arange(N, dtype=np.float64), indexing="ij")
    DI = np.cos(np.pi * nn * (kk + 0.5) / N)
    DI[:, 0] *= (1.0 / N) ** 0.5
    DI[:, 1:] *= (2.0 / N) ** 0.5
    return DI


def idst_matrix(N):
    kk, nn = np.meshgrid(np.arange(N, dtype=np.float64),
                         np.arange(N, dtype=np.float64), indexing="ij")
    DI = np.sin(np.pi * (nn + 1) * (kk + 0.5) / N)
    DI[:, N - 1] *= (1.0 / N) ** 0.5
    DI[:, : N - 1] *= (2.0 / N) ** 0.5
    return DI


def build_itsht_params(L, key, *, weight_dtype=jnp.bfloat16, col_tile=512):
    """Fold the whole ITSHT linear chain into one stacked bf16 weight matrix."""
    R, N = 2 * L - 1, 2 * L
    K1, K3 = R * L, N * N

    # TODO(synk): wigner_d_SHT_weights_half_pi is not provided in the reference
    # source; substitute a deterministic synthetic matrix of the required shape
    # ((2L-1)*L, (2L-1)*2L) == DT^T of the IDLT.
    DT_T64 = np.asarray(
        0.05 * jax.random.normal(key, (K1, R * N), dtype=jnp.float32),
        dtype=np.float64)

    if (L - 1) % 2 == 1:
        cInd = np.arange(1, R, 2)
        sInd = np.arange(0, R, 2)
    else:
        sInd = np.arange(1, R, 2)
        cInd = np.arange(0, R, 2)

    # weightedDCST('ic') / ('is') are nn.Linear layers: y = x @ idctMatrix(2L).T etc.
    DC = idct_matrix(N).T
    DS = idst_matrix(N).T
    iCm = 1.0 / norm_cm(L)                           # (R,)

    # ---- fold IDLT + per-row iDCT/iDST + 1/Cm into T: (K1, R, N), float64 ----
    DT3 = DT_T64.reshape(K1, R, N)
    T = DT3.copy()
    T[:, cInd, :] = DT3[:, cInd, :] @ DC
    T[:, sInd, :] = DT3[:, sInd, :] @ DS
    T = T * iCm[None, :, None]

    # ---- fold cat(zeros) + ifftshift + ifft(norm='forward') along m axis ----
    #   out[n] = (-1)^n * sum_k psiHat[k] * exp(2*pi*i*(k+1)*n / (2L))
    n = np.arange(N)[:, None]
    k = np.arange(R)[None, :]
    A = (((-1.0) ** n) * np.exp(2j * np.pi * (k + 1) * n / N)).T      # (R, N)

    # Structured contraction (no dense kron): Wr/Wi are (K1, K3).
    Wr = np.einsum("prt,rn->pnt", T, A.real).reshape(K1, K3)
    Wi = np.einsum("prt,rn->pnt", T, A.imag).reshape(K1, K3)

    # ---- stack real/imag paths, zero-pad lane dims to multiples of 128 ----
    #   [xr | xi] @ [[Wr, Wi], [-Wi, Wr]] = [yr | yi]
    K1p = _round_up(K1, 128)
    K3p = _round_up(K3, 128)
    total = 2 * K3p
    tn = total if total <= col_tile else col_tile
    totalp = _round_up(total, tn)

    W = np.zeros((2 * K1p, totalp), dtype=np.float64)
    W[:K1, :K3] = Wr
    W[:K1, K3p:K3p + K3] = Wi
    W[K1p:K1p + K1, :K3] = -Wi
    W[K1p:K1p + K1, K3p:K3p + K3] = Wr

    params = dict(W=jnp.asarray(W, weight_dtype))
    dims = dict(K1=K1, K1p=K1p, K3=K3, K3p=K3p, tn=tn, totalp=totalp)
    aux = dict(DT_T64=DT_T64, DC=DC, DS=DS, cInd=cInd, sInd=sInd, iCm=iCm)
    return params, dims, aux


# ---------------------------------------------------------------------------
# Pallas kernel: one MXU contraction per (batch tile, output-column tile)
# ---------------------------------------------------------------------------
def itsht_kernel(x_ref, w_ref, o_ref):
    o_ref[...] = jnp.dot(x_ref[...], w_ref[...],
                         preferred_element_type=jnp.float32)


def itsht_forward(Psi, params, dims, L, *, batch_tile=128,
                  act_dtype=jnp.bfloat16):
    """Psi: complex64 (b, 2L-1, L) -> complex64 (b, 2L, 2L)."""
    b = Psi.shape[0]
    N = 2 * L
    K1, K1p = dims["K1"], dims["K1p"]
    K3, K3p = dims["K3"], dims["K3p"]
    tn, totalp = dims["tn"], dims["totalp"]

    xr = jnp.real(Psi).reshape(b, K1)
    xi = jnp.imag(Psi).reshape(b, K1)

    # Adaptive batch tile: up to 128, multiple of 8, no gratuitous padding.
    bt = min(batch_tile, _round_up(max(b, 1), 8))
    bp = _round_up(b, bt)

    # Stacked, zero-padded activation slab [xr | xi] in bf16.
    X = jnp.zeros((bp, 2 * K1p), act_dtype)
    X = X.at[:b, :K1].set(xr.astype(act_dtype))
    X = X.at[:b, K1p:K1p + K1].set(xi.astype(act_dtype))

    grid = (bp // bt, totalp // tn)

    out = pl.pallas_call(
        itsht_kernel,
        grid=grid,
        in_specs=[
            pl.BlockSpec((bt, 2 * K1p), lambda i, j: (i, 0)),
            pl.BlockSpec((2 * K1p, tn), lambda i, j: (0, j)),
        ],
        out_specs=pl.BlockSpec((bt, tn), lambda i, j: (i, j)),
        out_shape=jax.ShapeDtypeStruct((bp, totalp), jnp.float32),
        compiler_params=pltpu.CompilerParams(
            dimension_semantics=("parallel", "parallel"),
            vmem_limit_bytes=64 * 1024 * 1024),
    )(X, params["W"])

    yr = out[:b, :K3]
    yi = out[:b, K3p:K3p + K3]
    return (yr + 1j * yi).reshape(b, N, N).astype(jnp.complex64)


# ---------------------------------------------------------------------------
# Pure numpy reference (float64), mirrors the PyTorch forward step by step
# ---------------------------------------------------------------------------
def reference_itsht(Psi, L, aux):
    b = Psi.shape[0]
    R, N = 2 * L - 1, 2 * L
    parts = []
    for x in (np.real(Psi).astype(np.float64), np.imag(Psi).astype(np.float64)):
        h = x.reshape(b, R * L) @ aux["DT_T64"]          # (b, R*N)
        h = h.reshape(b, R, N).copy()
        h[:, aux["cInd"], :] = h[:, aux["cInd"], :] @ aux["DC"]
        h[:, aux["sInd"], :] = h[:, aux["sInd"], :] @ aux["DS"]
        h = aux["iCm"][None, :, None] * h
        parts.append(h)
    psiHatC = parts[0] + 1j * parts[1]
    z = np.concatenate([np.zeros((b, 1, N)), psiHatC], axis=1)
    return np.fft.ifft(np.fft.ifftshift(z, axes=1), axis=1, norm="forward")


# ---------------------------------------------------------------------------
if __name__ == "__main__":
    L = 8          # bandlimit
    b = 2          # batch
    R = 2 * L - 1

    key = jax.random.PRNGKey(0)
    kw, kr, ki = jax.random.split(key, 3)

    params, dims, aux = build_itsht_params(L, kw)

    Psi = (jax.random.normal(kr, (b, R, L), dtype=jnp.float32)
           + 1j * jax.random.normal(ki, (b, R, L), dtype=jnp.float32)
           ).astype(jnp.complex64)

    out = itsht_forward(Psi, params, dims, L)
    out = jax.block_until_ready(out)

    ref = reference_itsht(np.asarray(Psi), L, aux)

    assert out.shape == (b, 2 * L, 2 * L), out.shape
    err = np.max(np.abs(np.asarray(out) - ref)) / (np.max(np.abs(ref)) + 1e-6)
    assert err < 2e-2, f"max relative error too large: {err}"

    print("KERNEL_OK")
</pallas_src>

<mosaic_0001>
module attributes {stable_mosaic.version = 11 : i64} {
  func.func @itsht_kernel(%arg0: i32, %arg1: i32, %arg2: memref<8x256xbf16, #tpu.memory_space<vmem>>, %arg3: memref<256x512xbf16, #tpu.memory_space<vmem>>, %arg4: memref<8x512xf32, #tpu.memory_space<vmem>>) attributes {dimension_semantics = [#tpu.dimension_semantics<parallel>, #tpu.dimension_semantics<parallel>], iteration_bounds = array<i64: 1, 1>, scalar_prefetch = 0 : i64, scratch_operands = 0 : i64, tpu.core_type = #tpu.core_type<tc>, window_params = [{transform_indices = @transform_0, window_bounds = array<i64: 8, 256>}, {transform_indices = @transform_1, window_bounds = array<i64: 256, 512>}, {transform_indices = @transform_2, window_bounds = array<i64: 8, 512>}]} {
    %c0 = arith.constant 0 : index
    %c0_0 = arith.constant 0 : index
    %0 = vector.load %arg2[%c0, %c0_0] : memref<8x256xbf16, #tpu.memory_space<vmem>>, vector<8x256xbf16>
    %c0_1 = arith.constant 0 : index
    %c0_2 = arith.constant 0 : index
    %1 = vector.load %arg3[%c0_1, %c0_2] : memref<256x512xbf16, #tpu.memory_space<vmem>>, vector<256x512xbf16>
    %cst = arith.constant dense<0.000000e+00> : vector<8x512xf32>
    %2 = tpu.matmul %0, %1, %cst {dimension_numbers = #tpu.dot_dimension_numbers<[1], [0], [0], [1], [0, 0, 1, 1], [], []>} : vector<8x256xbf16>, vector<256x512xbf16>, vector<8x512xf32> -> vector<8x512xf32>
    %c0_3 = arith.constant 0 : index
    %c0_4 = arith.constant 0 : index
    %3 = vector.load %arg4[%c0_3, %c0_4] : memref<8x512xf32, #tpu.memory_space<vmem>>, vector<8x512xf32>
    tpu.vector_store %arg4[%c0_3, %c0_4], %2 {strides = array<i32>} : memref<8x512xf32, #tpu.memory_space<vmem>>, vector<8x512xf32>,
    return
  }
  func.func @transform_0(%arg0: i32, %arg1: i32) -> (i32, i32) {
    %c0_i32 = arith.constant 0 : i32
    %c0_i32_0 = arith.constant 0 : i32
    return %arg0, %c0_i32 : i32, i32
  }
  func.func @transform_1(%arg0: i32, %arg1: i32) -> (i32, i32) {
    %c0_i32 = arith.constant 0 : i32
    %c0_i32_0 = arith.constant 0 : i32
    return %c0_i32, %arg1 : i32, i32
  }
  func.func @transform_2(%arg0: i32, %arg1: i32) -> (i32, i32) {
    %c0_i32 = arith.constant 0 : i32
    return %arg0, %arg1 : i32, i32
  }
}

</mosaic_0001>

<llo_original>
// kernel: tpu_custom_call.1
$region0: #{tpu_custom_call.1}
  #allocation0 [shape = 'u32[]', space=smem, size = 0x4, offset = 0x4, fixed_abs, tag = 'smem constant byte address 0x4 - core index']
  #allocation1 [shape = 'u32[144,128]{1,0:T(1,128)}', space=vmem, size = 0x12000, scoped, tag = 'internal scratch']
  %s0 = inlined_call_operand.hbm [shape: bf16[8,256], index: 0, kind: input, shape index: {}]
  %s1 = inlined_call_operand.hbm [shape: bf16[256,512], index: 1, kind: input, shape index: {}]
  %s2 = inlined_call_operand.hbm [shape: f32[8,512], index: 2, kind: output, shape index: {}]
  %s3 = sld [smem:[#allocation0]]
  $region26: #{tpu_custom_call.1} parent=0
    _
  %s5 = ssub.s32 1, %s3
  %s6 = scalar_select 0, %s5, %s3
  $region1: #{tpu_custom_call.1} parent=0
    #allocation2 [shape = 'u8[4096]{0}', space=vmem, size = 0x1000, scoped, tag = 'input window, operand 0, single buffered']
    #allocation3 [shape = 's32[1]{0}', space=sflag, size = 0x4, scoped, tag = 'scoped memory for tpu_custom_call.1']
    #allocation4 [shape = 's32[1]{0}', space=sflag, size = 0x4, scoped, tag = 'scoped memory for tpu_custom_call.1']
    #allocation5 [shape = 'u8[262144]{0}', space=vmem, size = 0x40000, scoped, tag = 'input window, operand 1, single buffered']
    #allocation6 [shape = 's32[1]{0}', space=sflag, size = 0x4, scoped, tag = 'scoped memory for tpu_custom_call.1']
    #allocation7 [shape = 'u8[16384]{0}', space=vmem, size = 0x4000, scoped, tag = 'output window, operand 0, single buffered']
    %7 = vsyncpa [#allocation3], 0
    %8 = vsyncpa [#allocation6], 0
    %9 = vsyncpa [#allocation4], 0
    // Predicated region
    $region2: #{tpu_custom_call.1} parent=1 // pred_check
      _
    $region3: #{tpu_custom_call.1} parent=1 // pred_check_branch
      %11 = sbr.rel (0) target = $region5
    $region4: #{tpu_custom_call.1} parent=1 // pred_region
      %s13 = ssub.s32 128, 128
      %14 = vsyncadd [#allocation3], %s13
      %s16 = sshll.u32 [#allocation2], 4
      %s17 = int_to_ptr.vmem [resolvable:$true] %s16
      %19 = dma.hbm_to_vmem [thread:$0]  %s0, 128, %s17, [#allocation3]
    $region5: #{tpu_custom_call.1} parent=1 // pred_fallthru
      _
    // Predicated region
    $region6: #{tpu_custom_call.1} parent=1 // pred_check
      _
    $region7: #{tpu_custom_call.1} parent=1 // pred_check_branch
      %21 = sbr.rel (0) target = $region9
    $region8: #{tpu_custom_call.1} parent=1 // pred_region
      %s23 = ssub.s32 8192, 8192
      %24 = vsyncadd [#allocation6], %s23
      %s25 = sshll.u32 [#allocation5], 4
      %s26 = int_to_ptr.vmem [resolvable:$true] %s25
      %31 = dma.hbm_to_vmem [thread:$0]  %s1, 8192, %s26, [#allocation6], 256, 256, 16
    $region9: #{tpu_custom_call.1} parent=1 // pred_fallthru
      _
    // Predicated region
    $region10: #{tpu_custom_call.1} parent=1 // pred_check
      _
    $region11: #{tpu_custom_call.1} parent=1 // pred_check_branch
      %33 = sbr.rel (0) target = $region13
    $region12: #{tpu_custom_call.1} parent=1 // pred_region
      %34 = dma.done [#allocation3], 128
    $region13: #{tpu_custom_call.1} parent=1 // pred_fallthru
      _
    // Predicated region
    $region14: #{tpu_custom_call.1} parent=1 // pred_check
      _
    $region15: #{tpu_custom_call.1} parent=1 // pred_check_branch
      %36 = sbr.rel (0) target = $region17
    $region16: #{tpu_custom_call.1} parent=1 // pred_region
      %37 = dma.done [#allocation6], 8192
    $region17: #{tpu_custom_call.1} parent=1 // pred_fallthru
      _
    %v38 = vld [vmem:[#allocation2] sm:$0xff]
    %v39 = vld [vmem:[#allocation5] sm:$0xff]
    %v40 = vld [vmem:[#allocation5 + $0x8] sm:$0xff]
    %v41 = vld [vmem:[#allocation5 + $0x10] sm:$0xff]
    %v42 = vld [vmem:[#allocation5 + $0x18] sm:$0xff]
    %v43 = vld [vmem:[#allocation5 + $0x20] sm:$0xff]
    %v44 = vld [vmem:[#allocation5 + $0x28] sm:$0xff]
    %v45 = vld [vmem:[#allocation5 + $0x30] sm:$0xff]
    %v46 = vld [vmem:[#allocation5 + $0x38] sm:$0xff]
    %v47 = vld [vmem:[#allocation5 + $0x40] sm:$0xff]
    %v48 = vld [vmem:[#allocation5 + $0x48] sm:$0xff]
    %v49 = vld [vmem:[#allocation5 + $0x50] sm:$0xff]
    %v50 = vld [vmem:[#allocation5 + $0x58] sm:$0xff]
    %v51 = vld [vmem:[#allocation5 + $0x60] sm:$0xff]
    %v52 = vld [vmem:[#allocation5 + $0x68] sm:$0xff]
    %v53 = vld [vmem:[#allocation5 + $0x70] sm:$0xff]
    %v54 = vld [vmem:[#allocation5 + $0x78] sm:$0xff]
    %v55 = vld [vmem:[#allocation5 + $0x80] sm:$0xff]
    %v56 = vld [vmem:[#allocation5 + $0x88] sm:$0xff]
    %v57 = vld [vmem:[#allocation5 + $0x90] sm:$0xff]
    %v58 = vld [vmem:[#allocation5 + $0x98] sm:$0xff]
    %v59 = vld [vmem:[#allocation5 + $0xa0] sm:$0xff]
    %v60 = vld [vmem:[#allocation5 + $0xa8] sm:$0xff]
    %v61 = vld [vmem:[#allocation5 + $0xb0] sm:$0xff]
    %v62 = vld [vmem:[#allocation5 + $0xb8] sm:$0xff]
    %v63 = vld [vmem:[#allocation5 + $0xc0] sm:$0xff]
    %v64 = vld [vmem:[#allocation5 + $0xc8] sm:$0xff]
    %v65 = vld [vmem:[#allocation5 + $0xd0] sm:$0xff]
    %v66 = vld [vmem:[#allocation5 + $0xd8] sm:$0xff]
    %v67 = vld [vmem:[#allocation5 + $0xe0] sm:$0xff]
    %v68 = vld [vmem:[#allocation5 + $0xe8] sm:$0xff]
    %v69 = vld [vmem:[#allocation5 + $0xf0] sm:$0xff]
    %v70 = vld [vmem:[#allocation5 + $0xf8] sm:$0xff]
    %v71 = vld [vmem:[#allocation5 + $0x100] sm:$0xff]
    %v72 = vld [vmem:[#allocation5 + $0x108] sm:$0xff]
    %v73 = vld [vmem:[#allocation5 + $0x110] sm:$0xff]
    %v74 = vld [vmem:[#allocation5 + $0x118] sm:$0xff]
    %v75 = vld [vmem:[#allocation5 + $0x120] sm:$0xff]
    %v76 = vld [vmem:[#allocation5 + $0x128] sm:$0xff]
    %v77 = vld [vmem:[#allocation5 + $0x130] sm:$0xff]
    %v78 = vld [vmem:[#allocation5 + $0x138] sm:$0xff]
    %v79 = vld [vmem:[#allocation5 + $0x140] sm:$0xff]
    %v80 = vld [vmem:[#allocation5 + $0x148] sm:$0xff]
    %v81 = vld [vmem:[#allocation5 + $0x150] sm:$0xff]
    %v82 = vld [vmem:[#allocation5 + $0x158] sm:$0xff]
    %v83 = vld [vmem:[#allocation5 + $0x160] sm:$0xff]
    %v84 = vld [vmem:[#allocation5 + $0x168] sm:$0xff]
    %v85 = vld [vmem:[#allocation5 + $0x170] sm:$0xff]
    %v86 = vld [vmem:[#allocation5 + $0x178] sm:$0xff]
    %v87 = vld [vmem:[#allocation5 + $0x180] sm:$0xff]
    %v88 = vld [vmem:[#allocation5 + $0x188] sm:$0xff]
    %v89 = vld [vmem:[#allocation5 + $0x190] sm:$0xff]
    %v90 = vld [vmem:[#allocation5 + $0x198] sm:$0xff]
    %v91 = vld [vmem:[#allocation5 + $0x1a0] sm:$0xff]
    %v92 = vld [vmem:[#allocation5 + $0x1a8] sm:$0xff]
    %v93 = vld [vmem:[#allocation5 + $0x1b0] sm:$0xff]
    %v94 = vld [vmem:[#allocation5 + $0x1b8] sm:$0xff]
    %v95 = vld [vmem:[#allocation5 + $0x1c0] sm:$0xff]
    %v96 = vld [vmem:[#allocation5 + $0x1c8] sm:$0xff]
    %v97 = vld [vmem:[#allocation5 + $0x1d0] sm:$0xff]
    %v98 = vld [vmem:[#allocation5 + $0x1d8] sm:$0xff]
    %v99 = vld [vmem:[#allocation5 + $0x1e0] sm:$0xff]
    %v100 = vld [vmem:[#allocation5 + $0x1e8] sm:$0xff]
    %v101 = vld [vmem:[#allocation5 + $0x1f0] sm:$0xff]
    %v102 = vld [vmem:[#allocation5 + $0x1f8] sm:$0xff]
    %v104 = vunpack.c.l.b16 %v38
    %v105 = vunpack.c.h.b16 %v38
    %v106 = vpack.c.b16 %v104, %v104
    %v107 = vpack.c.b16 %v105, %v105
    %v174 = vunpack.c.l.b16 %v39
    %v175 = vunpack.c.h.b16 %v39
    %v176 = vunpack.c.l.b16 %v40
    %v177 = vunpack.c.h.b16 %v40
    %v178 = vunpack.c.l.b16 %v41
    %v179 = vunpack.c.h.b16 %v41
    %v180 = vunpack.c.l.b16 %v42
    %v181 = vunpack.c.h.b16 %v42
    %v182 = vunpack.c.l.b16 %v43
    %v183 = vunpack.c.h.b16 %v43
    %v184 = vunpack.c.l.b16 %v44
    %v185 = vunpack.c.h.b16 %v44
    %v186 = vunpack.c.l.b16 %v45
    %v187 = vunpack.c.h.b16 %v45
    %v188 = vunpack.c.l.b16 %v46
    %v189 = vunpack.c.h.b16 %v46
    %v190 = vunpack.c.l.b16 %v47
    %v191 = vunpack.c.h.b16 %v47
    %v192 = vunpack.c.l.b16 %v48
    %v193 = vunpack.c.h.b16 %v48
    %v194 = vunpack.c.l.b16 %v49
    %v195 = vunpack.c.h.b16 %v49
    %v196 = vunpack.c.l.b16 %v50
    %v197 = vunpack.c.h.b16 %v50
    %v198 = vunpack.c.l.b16 %v51
    %v199 = vunpack.c.h.b16 %v51
    %v200 = vunpack.c.l.b16 %v52
    %v201 = vunpack.c.h.b16 %v52
    %v202 = vunpack.c.l.b16 %v53
    %v203 = vunpack.c.h.b16 %v53
    %v204 = vunpack.c.l.b16 %v54
    %v205 = vunpack.c.h.b16 %v54
    %v206 = vunpack.c.l.b16 %v55
    %v207 = vunpack.c.h.b16 %v55
    %v208 = vunpack.c.l.b16 %v56
    %v209 = vunpack.c.h.b16 %v56
    %v210 = vunpack.c.l.b16 %v57
    %v211 = vunpack.c.h.b16 %v57
    %v212 = vunpack.c.l.b16 %v58
    %v213 = vunpack.c.h.b16 %v58
    %v214 = vunpack.c.l.b16 %v59
    %v215 = vunpack.c.h.b16 %v59
    %v216 = vunpack.c.l.b16 %v60
    %v217 = vunpack.c.h.b16 %v60
    %v218 = vunpack.c.l.b16 %v61
    %v219 = vunpack.c.h.b16 %v61
    %v220 = vunpack.c.l.b16 %v62
    %v221 = vunpack.c.h.b16 %v62
    %v222 = vunpack.c.l.b16 %v63
    %v223 = vunpack.c.h.b16 %v63
    %v224 = vunpack.c.l.b16 %v64
    %v225 = vunpack.c.h.b16 %v64
    %v226 = vunpack.c.l.b16 %v65
    %v227 = vunpack.c.h.b16 %v65
    %v228 = vunpack.c.l.b16 %v66
    %v229 = vunpack.c.h.b16 %v66
    %v230 = vunpack.c.l.b16 %v67
    %v231 = vunpack.c.h.b16 %v67
    %v232 = vunpack.c.l.b16 %v68
    %v233 = vunpack.c.h.b16 %v68
    %v234 = vunpack.c.l.b16 %v69
    %v235 = vunpack.c.h.b16 %v69
    %v236 = vunpack.c.l.b16 %v70
    %v237 = vunpack.c.h.b16 %v70
    %v238 = vunpack.c.l.b16 %v71
    %v239 = vunpack.c.h.b16 %v71
    %v240 = vunpack.c.l.b16 %v72
    %v241 = vunpack.c.h.b16 %v72
    %v242 = vunpack.c.l.b16 %v73
    %v243 = vunpack.c.h.b16 %v73
    %v244 = vunpack.c.l.b16 %v74
    %v245 = vunpack.c.h.b16 %v74
    %v246 = vunpack.c.l.b16 %v75
    %v247 = vunpack.c.h.b16 %v75
    %v248 = vunpack.c.l.b16 %v76
    %v249 = vunpack.c.h.b16 %v76
    %v250 = vunpack.c.l.b16 %v77
    %v251 = vunpack.c.h.b16 %v77
    %v252 = vunpack.c.l.b16 %v78
    %v253 = vunpack.c.h.b16 %v78
    %v254 = vunpack.c.l.b16 %v79
    %v255 = vunpack.c.h.b16 %v79
    %v256 = vunpack.c.l.b16 %v80
    %v257 = vunpack.c.h.b16 %v80
    %v258 = vunpack.c.l.b16 %v81
    %v259 = vunpack.c.h.b16 %v81
    %v260 = vunpack.c.l.b16 %v82
    %v261 = vunpack.c.h.b16 %v82
    %v262 = vunpack.c.l.b16 %v83
    %v263 = vunpack.c.h.b16 %v83
    %v264 = vunpack.c.l.b16 %v84
    %v265 = vunpack.c.h.b16 %v84
    %v266 = vunpack.c.l.b16 %v85
    %v267 = vunpack.c.h.b16 %v85
    %v268 = vunpack.c.l.b16 %v86
    %v269 = vunpack.c.h.b16 %v86
    %v270 = vunpack.c.l.b16 %v87
    %v271 = vunpack.c.h.b16 %v87
    %v272 = vunpack.c.l.b16 %v88
    %v273 = vunpack.c.h.b16 %v88
    %v274 = vunpack.c.l.b16 %v89
    %v275 = vunpack.c.h.b16 %v89
    %v276 = vunpack.c.l.b16 %v90
    %v277 = vunpack.c.h.b16 %v90
    %v278 = vunpack.c.l.b16 %v91
    %v279 = vunpack.c.h.b16 %v91
    %v280 = vunpack.c.l.b16 %v92
    %v281 = vunpack.c.h.b16 %v92
    %v282 = vunpack.c.l.b16 %v93
    %v283 = vunpack.c.h.b16 %v93
    %v284 = vunpack.c.l.b16 %v94
    %v285 = vunpack.c.h.b16 %v94
    %v286 = vunpack.c.l.b16 %v95
    %v287 = vunpack.c.h.b16 %v95
    %v288 = vunpack.c.l.b16 %v96
    %v289 = vunpack.c.h.b16 %v96
    %v290 = vunpack.c.l.b16 %v97
    %v291 = vunpack.c.h.b16 %v97
    %v292 = vunpack.c.l.b16 %v98
    %v293 = vunpack.c.h.b16 %v98
    %v294 = vunpack.c.l.b16 %v99
    %v295 = vunpack.c.h.b16 %v99
    %v296 = vunpack.c.l.b16 %v100
    %v297 = vunpack.c.h.b16 %v100
    %v298 = vunpack.c.l.b16 %v101
    %v299 = vunpack.c.h.b16 %v101
    %v300 = vunpack.c.l.b16 %v102
    %v301 = vunpack.c.h.b16 %v102
    %v302 = vpack.c.b16 %v178, %v174
    %v303 = vpack.c.b16 %v179, %v175
    %v304 = vpack.c.b16 %v180, %v176
    %v305 = vpack.c.b16 %v181, %v177
    %v306 = vpack.c.b16 %v186, %v182
    %v307 = vpack.c.b16 %v187, %v183
    %v308 = vpack.c.b16 %v188, %v184
    %v309 = vpack.c.b16 %v189, %v185
    %v310 = vpack.c.b16 %v194, %v190
    %v311 = vpack.c.b16 %v195, %v191
    %v312 = vpack.c.b16 %v196, %v192
    %v313 = vpack.c.b16 %v197, %v193
    %v314 = vpack.c.b16 %v202, %v198
    %v315 = vpack.c.b16 %v203, %v199
    %v316 = vpack.c.b16 %v204, %v200
    %v317 = vpack.c.b16 %v205, %v201
    %v318 = vpack.c.b16 %v210, %v206
    %v319 = vpack.c.b16 %v211, %v207
    %v320 = vpack.c.b16 %v212, %v208
    %v321 = vpack.c.b16 %v213, %v209
    %v322 = vpack.c.b16 %v218, %v214
    %v323 = vpack.c.b16 %v219, %v215
    %v324 = vpack.c.b16 %v220, %v216
    %v325 = vpack.c.b16 %v221, %v217
    %v326 = vpack.c.b16 %v226, %v222
    %v327 = vpack.c.b16 %v227, %v223
    %v328 = vpack.c.b16 %v228, %v224
    %v329 = vpack.c.b16 %v229, %v225
    %v330 = vpack.c.b16 %v234, %v230
    %v331 = vpack.c.b16 %v235, %v231
    %v332 = vpack.c.b16 %v236, %v232
    %v333 = vpack.c.b16 %v237, %v233
    %v334 = vpack.c.b16 %v242, %v238
    %v335 = vpack.c.b16 %v243, %v239
    %v336 = vpack.c.b16 %v244, %v240
    %v337 = vpack.c.b16 %v245, %v241
    %v338 = vpack.c.b16 %v250, %v246
    %v339 = vpack.c.b16 %v251, %v247
    %v340 = vpack.c.b16 %v252, %v248
    %v341 = vpack.c.b16 %v253, %v249
    %v342 = vpack.c.b16 %v258, %v254
    %v343 = vpack.c.b16 %v259, %v255
    %v344 = vpack.c.b16 %v260, %v256
    %v345 = vpack.c.b16 %v261, %v257
    %v346 = vpack.c.b16 %v266, %v262
    %v347 = vpack.c.b16 %v267, %v263
    %v348 = vpack.c.b16 %v268, %v264
    %v349 = vpack.c.b16 %v269, %v265
    %v350 = vpack.c.b16 %v274, %v270
    %v351 = vpack.c.b16 %v275, %v271
    %v352 = vpack.c.b16 %v276, %v272
    %v353 = vpack.c.b16 %v277, %v273
    %v354 = vpack.c.b16 %v282, %v278
    %v355 = vpack.c.b16 %v283, %v279
    %v356 = vpack.c.b16 %v284, %v280
    %v357 = vpack.c.b16 %v285, %v281
    %v358 = vpack.c.b16 %v290, %v286
    %v359 = vpack.c.b16 %v291, %v287
    %v360 = vpack.c.b16 %v292, %v288
    %v361 = vpack.c.b16 %v293, %v289
    %v362 = vpack.c.b16 %v298, %v294
    %v363 = vpack.c.b16 %v299, %v295
    %v364 = vpack.c.b16 %v300, %v296
    %v365 = vpack.c.b16 %v301, %v297
    %430 = vmatprep.subr.bf16.mxu0 %v331
    %431 = vmatpush1.bf16.msra.mxu0 %v330
    %432 = vmatprep.subr.bf16.mxu0 %v327
    %433 = vmatpush1.bf16.msra.mxu0 %v326
    %434 = vmatprep.subr.bf16.mxu0 %v323
    %435 = vmatpush1.bf16.msra.mxu0 %v322
    %436 = vmatprep.subr.bf16.mxu0 %v319
    %437 = vmatpush1.bf16.msra.mxu0 %v318
    %438 = vmatprep.subr.bf16.mxu0 %v315
    %439 = vmatpush1.bf16.msra.mxu0 %v314
    %440 = vmatprep.subr.bf16.mxu0 %v311
    %441 = vmatpush1.bf16.msra.mxu0 %v310
    %442 = vmatprep.subr.bf16.mxu0 %v307
    %443 = vmatpush1.bf16.msra.mxu0 %v306
    %444 = vmatprep.subr.bf16.mxu0 %v303
    %445 = vmatpush1.bf16.msra.mxu0 %v302
    %446 = vmatprep.subr.bf16.mxu0 %v363
    %447 = vmatpush2.bf16.msra.mxu0 %v362
    %448 = vmatprep.subr.bf16.mxu0 %v359
    %449 = vmatpush2.bf16.msra.mxu0 %v358
    %450 = vmatprep.subr.bf16.mxu0 %v355
    %451 = vmatpush2.bf16.msra.mxu0 %v354
    %452 = vmatprep.subr.bf16.mxu0 %v351
    %453 = vmatpush2.bf16.msra.mxu0 %v350
    %454 = vmatprep.subr.bf16.mxu0 %v347
    %455 = vmatpush2.bf16.msra.mxu0 %v346
    %456 = vmatprep.subr.bf16.mxu0 %v343
    %457 = vmatpush2.bf16.msra.mxu0 %v342
    %458 = vmatprep.subr.bf16.mxu0 %v339
    %459 = vmatpush2.bf16.msra.mxu0 %v338
    %460 = vmatprep.subr.bf16.mxu0 %v335
    %461 = vmatpush2.bf16.msra.mxu0 %v334
    %462 = vmatprep.mubr.bf16.mxu0 %v107
    %463 = vmatmul.mubr.bf16.gmra.mxu0 %v106
    %v464 = vpop.f32.mrf.mxu0
    %v465 = vadd.f32 0.0, %v464
    %v466 = vpop.f32.mrf.mxu0
    %v467 = vadd.f32 0.0, %v466
    %v468 = vpop.f32.mrf.mxu0
    %v469 = vpop.f32.mrf.mxu0
    %470 = vdwg.mxu0
    %471 = vmatprep.subr.bf16.mxu0 %v333
    %472 = vmatpush1.bf16.msra.mxu0 %v332
    %473 = vmatprep.subr.bf16.mxu0 %v329
    %474 = vmatpush1.bf16.msra.mxu0 %v328
    %475 = vmatprep.subr.bf16.mxu0 %v325
    %476 = vmatpush1.bf16.msra.mxu0 %v324
    %477 = vmatprep.subr.bf16.mxu0 %v321
    %478 = vmatpush1.bf16.msra.mxu0 %v320
    %479 = vmatprep.subr.bf16.mxu0 %v317
    %480 = vmatpush1.bf16.msra.mxu0 %v316
    %481 = vmatprep.subr.bf16.mxu0 %v313
    %482 = vmatpush1.bf16.msra.mxu0 %v312
    %483 = vmatprep.subr.bf16.mxu0 %v309
    %484 = vmatpush1.bf16.msra.mxu0 %v308
    %485 = vmatprep.subr.bf16.mxu0 %v305
    %486 = vmatpush1.bf16.msra.mxu0 %v304
    %487 = vmatprep.subr.bf16.mxu0 %v365
    %488 = vmatpush2.bf16.msra.mxu0 %v364
    %489 = vmatprep.subr.bf16.mxu0 %v361
    %490 = vmatpush2.bf16.msra.mxu0 %v360
    %491 = vmatprep.subr.bf16.mxu0 %v357
    %492 = vmatpush2.bf16.msra.mxu0 %v356
    %493 = vmatprep.subr.bf16.mxu0 %v353
    %494 = vmatpush2.bf16.msra.mxu0 %v352
    %495 = vmatprep.subr.bf16.mxu0 %v349
    %496 = vmatpush2.bf16.msra.mxu0 %v348
    %497 = vmatprep.subr.bf16.mxu0 %v345
    %498 = vmatpush2.bf16.msra.mxu0 %v344
    %499 = vmatprep.subr.bf16.mxu0 %v341
    %500 = vmatpush2.bf16.msra.mxu0 %v340
    %501 = vmatprep.subr.bf16.mxu0 %v337
    %502 = vmatpush2.bf16.msra.mxu0 %v336
    %503 = vmatprep.mubr.bf16.mxu0 %v107
    %504 = vmatmul.mubr.bf16.gmra.mxu0 %v106
    %v505 = vpop.f32.mrf.mxu0
    %v506 = vadd.f32 0.0, %v505
    %v507 = vpop.f32.mrf.mxu0
    %v508 = vadd.f32 0.0, %v507
    %v509 = vpop.f32.mrf.mxu0
    %v510 = vpop.f32.mrf.mxu0
    %511 = vdwg.mxu0
    %512 = vst [vmem:[#allocation7] sm:$0xff] %v465
    %513 = vst [vmem:[#allocation7 + $0x8] sm:$0xff] %v467
    %514 = vst [vmem:[#allocation7 + $0x10] sm:$0xff] %v506
    %515 = vst [vmem:[#allocation7 + $0x18] sm:$0xff] %v508
    // Predicated region
    $region18: #{tpu_custom_call.1} parent=1 // pred_check
      _
    $region19: #{tpu_custom_call.1} parent=1 // pred_check_branch
      %517 = sbr.rel (0) target = $region21
    $region20: #{tpu_custom_call.1} parent=1 // pred_region
      %s519 = ssub.s32 512, 512
      %520 = vsyncadd [#allocation4], %s519
      %s522 = sshll.u32 [#allocation7], 4
      %s523 = int_to_ptr.vmem [resolvable:$true] %s522
      %525 = dma.vmem_to_hbm [thread:$0]  %s523, 512, %s2, [#allocation4]
    $region21: #{tpu_custom_call.1} parent=1 // pred_fallthru
      _
    // Predicated region
    $region22: #{tpu_custom_call.1} parent=1 // pred_check
      _
    $region23: #{tpu_custom_call.1} parent=1 // pred_check_branch
      %527 = sbr.rel (0) target = $region25
    $region24: #{tpu_custom_call.1} parent=1 // pred_region
      %528 = dma.done [#allocation4], 512
    $region25: #{tpu_custom_call.1} parent=1 // pred_fallthru
      _
    %529 = vsyncpa [#allocation3], 1
    %530 = vsyncpa [#allocation6], 1
    %531 = vsyncpa [#allocation4], 1

</llo_original>
